<compile_context>
chip_gen: v7x
topology: tpu7x:2x2x1
jax: 0.10.0
libtpu: 0.0.40
codegen_flags: <defaults>
</compile_context>

<pallas_src>
import jax
import jax.numpy as jnp
from jax.experimental import pallas as pl
from jax.experimental.pallas import tpu as pltpu


def relu_kernel(x_ref, o_ref):
    # One VPU op per vreg: vld + vmax (vs. scalar 0) + vst. HBM bandwidth is
    # the only binding resource.
    o_ref[...] = jnp.maximum(x_ref[...], 0)


def _pick_lanes(n):
    """Widest lane width (multiple of 128) that exactly divides n, else None."""
    for lanes in (8192, 4096, 2048, 1024, 512, 256, 128):
        if n % lanes == 0:
            return lanes
    return None


def _vmem_capacity_bytes():
    """Physical per-core VMEM, with a conservative (v7x) fallback."""
    try:
        cap = getattr(pltpu.get_tpu_info(), "vmem_capacity_bytes", None)
        if cap:
            return int(cap)
    except Exception:
        pass
    return 64 * 1024 * 1024


def relu(x: jax.Array, *, donate: bool = False) -> jax.Array:
    """ReLU(x) via a Pallas TPU kernel.

    Set donate=True only when the caller actually donates x's buffer; then the
    kernel runs in place on the HBM buffer. Default (False) avoids XLA's
    defensive copy for non-donated inputs.
    """
    orig_shape = x.shape
    orig_dtype = x.dtype
    n = x.size
    if n == 0:
        return x

    lanes = _pick_lanes(n)
    if lanes is None:
        # Rare ragged size (n not a multiple of 128): a fused XLA maximum is a
        # single HBM pass, cheaper than any pad/copy dance around the kernel.
        return jnp.maximum(x, 0)

    x2d = jnp.ravel(x).reshape(n // lanes, lanes)  # metadata-only reshape
    rows = n // lanes

    # --- size blocks from the chip's VMEM ------------------------------------
    physical_vmem = _vmem_capacity_bytes()
    # v7x: 48 MiB scoped limit / 8 MiB blocks; v5e/v6e: 96 MiB / 16 MiB blocks.
    vmem_limit = min(physical_vmem * 3 // 4, 96 * 1024 * 1024)
    block_bytes = vmem_limit // 6  # 4 x block (in+out, double-buffered) ~= 2/3 limit

    itemsize = jnp.dtype(orig_dtype).itemsize
    # Sublane-packing multiple: 8 for 32-bit, 16 for 16-bit, 32 for 8-bit.
    sub_mult = max(8, 32 // max(1, itemsize))
    row_bytes = lanes * itemsize
    tile_rows = max(sub_mult, (block_bytes // row_bytes) // sub_mult * sub_mult)

    if tile_rows >= rows:
        # Block would cover the whole array -> grid of 1 step. On v7x that
        # leaves one TensorCore idle, so split into 2 aligned steps when legal;
        # otherwise fall back to the (always layout-legal) full-extent block.
        half = -(-rows // 2)
        half_aligned = -(-half // sub_mult) * sub_mult
        tile_rows = half_aligned if half_aligned < rows else rows

    # Ragged last block is handled by Pallas (masked OOB stores) -> no row pad.
    grid = (pl.cdiv(rows, tile_rows),)

    out2d = pl.pallas_call(
        relu_kernel,
        out_shape=jax.ShapeDtypeStruct((rows, lanes), orig_dtype),
        grid_spec=pltpu.PrefetchScalarGridSpec(
            num_scalar_prefetch=0,
            grid=grid,
            in_specs=[pl.BlockSpec((tile_rows, lanes), lambda i: (i, 0))],
            out_specs=pl.BlockSpec((tile_rows, lanes), lambda i: (i, 0)),
        ),
        compiler_params=pltpu.CompilerParams(
            dimension_semantics=("parallel",),  # shard grid across v7x's 2 TCs
            vmem_limit_bytes=vmem_limit,
        ),
        # Opt-in in-place update: only alias when the caller truly donates x.
        input_output_aliases=({0: 0} if donate else {}),
    )(x2d)

    return out2d.reshape(orig_shape)


if __name__ == "__main__":
    key = jax.random.PRNGKey(0)
    # NCHW input, small shapes: batch=2, channels=4, spatial=16x16
    x = jax.random.normal(key, (2, 4, 16, 16), dtype=jnp.float32)

    y_ref = jnp.maximum(x, 0.0)

    y = relu(x)
    jax.block_until_ready(y)

    assert y.shape == x.shape and y.dtype == x.dtype
    assert jnp.allclose(y, y_ref), "mismatch vs reference ReLU"

    # TODO(synk): backward pass (grad * drelu(input)) is module bookkeeping,
    # not part of forward; not implemented here.
    print("KERNEL_OK")
</pallas_src>

<mosaic_0001>
module attributes {stable_mosaic.version = 11 : i64} {
  func.func @relu_kernel(%arg0: i32, %arg1: memref<1x2048xf32, #tpu.memory_space<vmem>>, %arg2: memref<1x2048xf32, #tpu.memory_space<vmem>>) attributes {dimension_semantics = [#tpu.dimension_semantics<parallel>], iteration_bounds = array<i64: 1>, scalar_prefetch = 0 : i64, scratch_operands = 0 : i64, tpu.core_type = #tpu.core_type<tc>, window_params = [{transform_indices = @transform_0, window_bounds = array<i64: 1, 2048>}, {transform_indices = @transform_1, window_bounds = array<i64: 1, 2048>}]} {
    %c0 = arith.constant 0 : index
    %c0_0 = arith.constant 0 : index
    %0 = vector.load %arg1[%c0, %c0_0] : memref<1x2048xf32, #tpu.memory_space<vmem>>, vector<1x2048xf32>
    %cst = arith.constant 0.000000e+00 : f32
    %1 = vector.broadcast %cst : f32 to vector<1x2048xf32>
    %2 = arith.maximumf %0, %1 : vector<1x2048xf32>
    %c0_1 = arith.constant 0 : index
    %c0_2 = arith.constant 0 : index
    %3 = vector.load %arg2[%c0_1, %c0_2] : memref<1x2048xf32, #tpu.memory_space<vmem>>, vector<1x2048xf32>
    tpu.vector_store %arg2[%c0_1, %c0_2], %2 {strides = array<i32>} : memref<1x2048xf32, #tpu.memory_space<vmem>>, vector<1x2048xf32>,
    return
  }
  func.func @transform_0(%arg0: i32) -> (i32, i32) {
    %c0_i32 = arith.constant 0 : i32
    %c0_i32_0 = arith.constant 0 : i32
    return %arg0, %c0_i32 : i32, i32
  }
  func.func @transform_1(%arg0: i32) -> (i32, i32) {
    %c0_i32 = arith.constant 0 : i32
    %c0_i32_0 = arith.constant 0 : i32
    return %arg0, %c0_i32 : i32, i32
  }
}

</mosaic_0001>

<llo_original>
// kernel: tpu_custom_call.1
$region0: #{tpu_custom_call.1}
  #allocation0 [shape = 'u32[]', space=smem, size = 0x4, offset = 0x4, fixed_abs, tag = 'smem constant byte address 0x4 - core index']
  #allocation1 [shape = 'u32[144,128]{1,0:T(1,128)}', space=vmem, size = 0x12000, scoped, tag = 'internal scratch']
  %s0 = inlined_call_operand.hbm [shape: f32[1,2048], index: 0, kind: input, shape index: {}]
  %s1 = inlined_call_operand.hbm [shape: f32[1,2048], index: 1, kind: output, shape index: {}]
  %s2 = sld [smem:[#allocation0]]
  $region18: #{tpu_custom_call.1} parent=0
    _
  %s4 = ssub.s32 1, %s2
  %s5 = scalar_select 0, %s4, %s2
  $region1: #{tpu_custom_call.1} parent=0
    #allocation2 [shape = 'u8[8192]{0}', space=vmem, size = 0x2000, scoped, tag = 'input window, operand 0, single buffered']
    #allocation3 [shape = 's32[1]{0}', space=sflag, size = 0x4, scoped, tag = 'scoped memory for tpu_custom_call.1']
    #allocation4 [shape = 's32[1]{0}', space=sflag, size = 0x4, scoped, tag = 'scoped memory for tpu_custom_call.1']
    #allocation5 [shape = 'u8[8192]{0}', space=vmem, size = 0x2000, scoped, tag = 'output window, operand 0, single buffered']
    %6 = vsyncpa [#allocation3], 0
    %7 = vsyncpa [#allocation4], 0
    // Predicated region
    $region2: #{tpu_custom_call.1} parent=1 // pred_check
      _
    $region3: #{tpu_custom_call.1} parent=1 // pred_check_branch
      %9 = sbr.rel (0) target = $region5
    $region4: #{tpu_custom_call.1} parent=1 // pred_region
      %s11 = ssub.s32 256, 256
      %12 = vsyncadd [#allocation3], %s11
      %s14 = sshll.u32 [#allocation2], 4
      %s15 = int_to_ptr.vmem [resolvable:$true] %s14
      %17 = dma.hbm_to_vmem [thread:$0]  %s0, 256, %s15, [#allocation3]
    $region5: #{tpu_custom_call.1} parent=1 // pred_fallthru
      _
    // Predicated region
    $region6: #{tpu_custom_call.1} parent=1 // pred_check
      _
    $region7: #{tpu_custom_call.1} parent=1 // pred_check_branch
      %19 = sbr.rel (0) target = $region9
    $region8: #{tpu_custom_call.1} parent=1 // pred_region
      %20 = dma.done [#allocation3], 256
    $region9: #{tpu_custom_call.1} parent=1 // pred_fallthru
      _
    %v21 = vld [vmem:[#allocation2] sm:$0xff]
    %v22 = vld [vmem:[#allocation2 + $0x8] sm:$0xff]
    %v23 = vmax.f32 %v21, 0.0
    %v24 = vmax.f32 %v22, 0.0
    %25 = vst [vmem:[#allocation5] sm:$0xff] %v23
    %26 = vst [vmem:[#allocation5 + $0x8] sm:$0xff] %v24
    // Predicated region
    $region10: #{tpu_custom_call.1} parent=1 // pred_check
      _
    $region11: #{tpu_custom_call.1} parent=1 // pred_check_branch
      %28 = sbr.rel (0) target = $region13
    $region12: #{tpu_custom_call.1} parent=1 // pred_region
      %s30 = ssub.s32 256, 256
      %31 = vsyncadd [#allocation4], %s30
      %s33 = sshll.u32 [#allocation5], 4
      %s34 = int_to_ptr.vmem [resolvable:$true] %s33
      %36 = dma.vmem_to_hbm [thread:$0]  %s34, 256, %s1, [#allocation4]
    $region13: #{tpu_custom_call.1} parent=1 // pred_fallthru
      _
    // Predicated region
    $region14: #{tpu_custom_call.1} parent=1 // pred_check
      _
    $region15: #{tpu_custom_call.1} parent=1 // pred_check_branch
      %38 = sbr.rel (0) target = $region17
    $region16: #{tpu_custom_call.1} parent=1 // pred_region
      %39 = dma.done [#allocation4], 256
    $region17: #{tpu_custom_call.1} parent=1 // pred_fallthru
      _
    %40 = vsyncpa [#allocation3], 1
    %41 = vsyncpa [#allocation4], 1

</llo_original>
